<compile_context>
chip_gen: v5e
topology: v5e:2x2
jax: 0.10.0
libtpu: 0.0.40
codegen_flags: <defaults>
</compile_context>

<pallas_src>
import functools

import jax
import jax.numpy as jnp
from jax import lax
from jax.experimental import pallas as pl
from jax.experimental.pallas import tpu as pltpu


def _round_up(x, m):
    return ((x + m - 1) // m) * m


def _make_conv_silu_kernel(shifts, tm):
    """o[oc, m] = silu( sum_p W_p[oc, :] @ x[:, m + shift_p] + b[oc] )."""

    def kernel(xa_ref, xb_ref, w_ref, b_ref, o_ref, x2_ref):
        # xa_ref/xb_ref: (C, tm) current / next input tile (compute dtype)
        # w_ref: (P, OC, C) per-tap weights   b_ref: (OC, 1) f32 bias
        # o_ref: (OC, tm) output tile         x2_ref: (C, 2*tm) VMEM scratch
        x2_ref[:, :tm] = xa_ref[...]
        x2_ref[:, tm:] = xb_ref[...]
        acc = jnp.zeros(o_ref.shape, jnp.float32)
        for p, s in enumerate(shifts):          # static unroll over KH*KW taps
            win = x2_ref[:, s:s + tm]           # (C, tm) shifted window (static slice)
            acc = acc + jnp.dot(w_ref[p], win,
                                preferred_element_type=jnp.float32)
        x = acc + b_ref[...]                    # f32 epilogue (bias + SiLU)
        o_ref[...] = (x * jax.nn.sigmoid(x)).astype(o_ref.dtype)

    return kernel


def _choose_tm(L, halo, C, OC, in_bytes, out_bytes, budget_bytes=6 << 20):
    """Largest lane tile whose per-step VMEM working set fits the budget."""
    tm_min = max(256, _round_up(halo + 1, 128))   # need halo <= tm
    tm = tm_min
    for cand in (256, 512, 1024, 2048, 4096, 8192):
        per_step = (2 * (2 * C * cand * in_bytes + OC * cand * out_bytes)  # dbl-buffered streams
                    + 2 * C * cand * in_bytes                              # halo scratch
                    + OC * cand * 4)                                       # f32 accumulator
        if cand >= tm_min and per_step <= budget_bytes:
            tm = cand
    # Keep >= 2 grid steps when the problem allows it (v7x: 2 TCs share the grid).
    half = _round_up(pl.cdiv(L, 2), 128)
    if half >= tm_min:
        tm = min(tm, half)
    return max(tm, tm_min)


@functools.partial(jax.jit,
                   static_argnames=("stride", "padding", "dilation", "compute_dtype"))
def silu2d(x, weight, bias, *, stride=(1, 1), padding=(0, 0), dilation=(1, 1),
           compute_dtype=jnp.bfloat16):
    """x: (N, C, H, W) NCHW.  weight: (OC, C, KH, KW).  bias: (OC,)."""
    N, C, H, W = x.shape
    OC, _, KH, KW = weight.shape
    sh, sw = stride
    ph, pw = padding
    dh, dw = dilation
    OH = (H + 2 * ph - dh * (KH - 1) - 1) // sh + 1
    OW = (W + 2 * pw - dw * (KW - 1) - 1) // sw + 1
    Hp, Wp = H + 2 * ph, W + 2 * pw

    # Pad once and flatten batch+spatial onto the lane axis: (C, N*Hp*Wp).
    xp = jnp.pad(x, ((0, 0), (0, 0), (ph, ph), (pw, pw)))
    L = N * Hp * Wp
    xf = xp.transpose(1, 0, 2, 3).reshape(C, L).astype(compute_dtype)

    # Per-tap lane shifts into the flattened input (compile-time constants).
    shifts = tuple(i * dh * Wp + j * dw for i in range(KH) for j in range(KW))
    halo = shifts[-1]
    P = KH * KW

    in_bytes = jnp.dtype(compute_dtype).itemsize
    out_bytes = jnp.dtype(x.dtype).itemsize
    tm = _choose_tm(L, halo, C, OC, in_bytes, out_bytes)
    assert tm % 128 == 0 and halo <= tm
    T = pl.cdiv(L, tm)

    # Zero-pad the flattened input so block t+1 (halo tile) always exists.
    xf = jnp.pad(xf, ((0, 0), (0, (T + 1) * tm - L)))

    # Weight per tap: (P, OC, C), matching PyTorch OIHW flattening order.
    w_taps = weight.reshape(OC, C, P).transpose(2, 0, 1).astype(compute_dtype)
    b_col = bias.reshape(OC, 1).astype(jnp.float32)

    kernel = _make_conv_silu_kernel(shifts, tm)

    # Explicit VMEM budget (double-buffered streams + resident weights + scratch).
    vmem_est = (2 * (2 * C * tm * in_bytes + OC * tm * out_bytes)
                + P * OC * C * in_bytes + OC * 4
                + 2 * C * tm * in_bytes + OC * tm * 4)
    vmem_limit = int(min(48 << 20, max(8 << 20, 4 * vmem_est)))

    cost = pl.CostEstimate(
        flops=2 * T * tm * C * OC * P,
        transcendentals=T * tm * OC,
        bytes_accessed=(2 * C * (T + 1) * tm * in_bytes
                        + P * OC * C * in_bytes + OC * 4
                        + T * tm * OC * out_bytes),
    )

    out_flat = pl.pallas_call(
        kernel,
        out_shape=jax.ShapeDtypeStruct((OC, T * tm), x.dtype),
        grid_spec=pltpu.PrefetchScalarGridSpec(
            num_scalar_prefetch=0,
            grid=(T,),
            in_specs=[
                pl.BlockSpec((C, tm), lambda t: (0, t)),        # current tile
                pl.BlockSpec((C, tm), lambda t: (0, t + 1)),    # next tile (halo)
                pl.BlockSpec((P, OC, C), lambda t: (0, 0, 0)),  # weights (resident)
                pl.BlockSpec((OC, 1), lambda t: (0, 0)),        # bias (resident)
            ],
            out_specs=pl.BlockSpec((OC, tm), lambda t: (0, t)),
            scratch_shapes=[pltpu.VMEM((C, 2 * tm), compute_dtype)],
        ),
        compiler_params=pltpu.CompilerParams(
            dimension_semantics=("parallel",),
            vmem_limit_bytes=vmem_limit),
        cost_estimate=cost,
    )(xf, xf, w_taps, b_col)

    # Dense (stride-1) output over the padded grid -> NCHW, then a strided slice
    # applies the conv stride and drops the garbage right/bottom border.
    out = out_flat[:, :L].reshape(OC, N, Hp, Wp).transpose(1, 0, 2, 3)
    out = out[:, :, 0:sh * (OH - 1) + 1:sh, 0:sw * (OW - 1) + 1:sw]
    return out


if __name__ == "__main__":
    # Small, conv-module-consistent shapes.
    N, C_in, C_out, H, W = 2, 4, 8, 16, 16
    KH, KW = 3, 3
    stride, padding, dilation = (1, 1), (1, 1), (1, 1)

    key = jax.random.PRNGKey(0)
    kx, kw_, kb = jax.random.split(key, 3)
    x = jax.random.normal(kx, (N, C_in, H, W), dtype=jnp.float32)
    # Deterministic PyTorch-like init (uniform in +/- 1/sqrt(fan_in)).
    fan_in = C_in * KH * KW
    bound = 1.0 / (fan_in ** 0.5)
    weight = jax.random.uniform(kw_, (C_out, C_in, KH, KW),
                                minval=-bound, maxval=bound, dtype=jnp.float32)
    bias = jax.random.uniform(kb, (C_out,), minval=-bound, maxval=bound,
                              dtype=jnp.float32)

    out = silu2d(x, weight, bias, stride=stride, padding=padding,
                 dilation=dilation)
    jax.block_until_ready(out)

    # Reference check against XLA conv + SiLU (f32); bf16 compute => looser tol.
    ref = lax.conv_general_dilated(
        x, weight, window_strides=stride,
        padding=[(padding[0], padding[0]), (padding[1], padding[1])],
        rhs_dilation=dilation,
        dimension_numbers=("NCHW", "OIHW", "NCHW"))
    ref = ref + bias.reshape(1, C_out, 1, 1)
    ref = ref * jax.nn.sigmoid(ref)
    assert out.shape == ref.shape == (N, C_out, H, W)
    assert jnp.allclose(out, ref, atol=2e-2, rtol=2e-2), \
        float(jnp.max(jnp.abs(out - ref)))

    print("KERNEL_OK")
</pallas_src>

<mosaic_0001>
module attributes {stable_mosaic.version = 11 : i64} {
  func.func @kernel(%arg0: i32, %arg1: memref<4x384xbf16, #tpu.memory_space<vmem>>, %arg2: memref<4x384xbf16, #tpu.memory_space<vmem>>, %arg3: memref<9x8x4xbf16, #tpu.memory_space<vmem>>, %arg4: memref<8x1xf32, #tpu.memory_space<vmem>>, %arg5: memref<8x384xf32, #tpu.memory_space<vmem>>, %arg6: memref<4x768xbf16, #tpu.memory_space<vmem>>) attributes {dimension_semantics = [#tpu.dimension_semantics<parallel>], iteration_bounds = array<i64: 2>, scalar_prefetch = 0 : i64, scratch_operands = 1 : i64, tpu.core_type = #tpu.core_type<tc>, window_params = [{transform_indices = @transform_0, window_bounds = array<i64: 4, 384>}, {transform_indices = @transform_1, window_bounds = array<i64: 4, 384>}, {pipeline_mode = #tpu.pipeline_mode<synchronous>, transform_indices = @transform_2, window_bounds = array<i64: 9, 8, 4>}, {pipeline_mode = #tpu.pipeline_mode<synchronous>, transform_indices = @transform_3, window_bounds = array<i64: 8, 1>}, {transform_indices = @transform_4, window_bounds = array<i64: 8, 384>}]} {
    %c0 = arith.constant 0 : index
    %c0_0 = arith.constant 0 : index
    %0 = vector.load %arg1[%c0, %c0_0] : memref<4x384xbf16, #tpu.memory_space<vmem>>, vector<4x384xbf16>
    %c0_1 = arith.constant 0 : index
    %c0_2 = arith.constant 0 : index
    %1 = vector.load %arg6[%c0_1, %c0_2] : memref<4x768xbf16, #tpu.memory_space<vmem>>, vector<4x384xbf16>
    tpu.vector_store %arg6[%c0_1, %c0_2], %0 {strides = array<i32>} : memref<4x768xbf16, #tpu.memory_space<vmem>>, vector<4x384xbf16>,
    %c0_3 = arith.constant 0 : index
    %c0_4 = arith.constant 0 : index
    %2 = vector.load %arg2[%c0_3, %c0_4] : memref<4x384xbf16, #tpu.memory_space<vmem>>, vector<4x384xbf16>
    %c0_5 = arith.constant 0 : index
    %c384 = arith.constant 384 : index
    %3 = vector.load %arg6[%c0_5, %c384] : memref<4x768xbf16, #tpu.memory_space<vmem>>, vector<4x384xbf16>
    tpu.vector_store %arg6[%c0_5, %c384], %2 {strides = array<i32>} : memref<4x768xbf16, #tpu.memory_space<vmem>>, vector<4x384xbf16>,
    %cst = arith.constant 0.000000e+00 : f32
    %4 = vector.broadcast %cst : f32 to vector<8x384xf32>
    %c0_6 = arith.constant 0 : index
    %c0_7 = arith.constant 0 : index
    %5 = vector.load %arg6[%c0_6, %c0_7] : memref<4x768xbf16, #tpu.memory_space<vmem>>, vector<4x384xbf16>
    %c0_8 = arith.constant 0 : index
    %c0_9 = arith.constant 0 : index
    %c0_10 = arith.constant 0 : index
    %6 = vector.load %arg3[%c0_8, %c0_9, %c0_10] : memref<9x8x4xbf16, #tpu.memory_space<vmem>>, vector<1x8x4xbf16>
    %7 = vector.shape_cast %6 : vector<1x8x4xbf16> to vector<8x4xbf16>
    %cst_11 = arith.constant dense<0.000000e+00> : vector<8x384xf32>
    %8 = tpu.matmul %7, %5, %cst_11 {dimension_numbers = #tpu.dot_dimension_numbers<[1], [0], [0], [1], [0, 0, 1, 1], [], []>} : vector<8x4xbf16>, vector<4x384xbf16>, vector<8x384xf32> -> vector<8x384xf32>
    %9 = arith.addf %4, %8 : vector<8x384xf32>
    %c0_12 = arith.constant 0 : index
    %c1 = arith.constant 1 : index
    %10 = vector.load %arg6[%c0_12, %c1] : memref<4x768xbf16, #tpu.memory_space<vmem>>, vector<4x384xbf16>
    %c1_13 = arith.constant 1 : index
    %c0_14 = arith.constant 0 : index
    %c0_15 = arith.constant 0 : index
    %11 = vector.load %arg3[%c1_13, %c0_14, %c0_15] : memref<9x8x4xbf16, #tpu.memory_space<vmem>>, vector<1x8x4xbf16>
    %12 = vector.shape_cast %11 : vector<1x8x4xbf16> to vector<8x4xbf16>
    %cst_16 = arith.constant dense<0.000000e+00> : vector<8x384xf32>
    %13 = tpu.matmul %12, %10, %cst_16 {dimension_numbers = #tpu.dot_dimension_numbers<[1], [0], [0], [1], [0, 0, 1, 1], [], []>} : vector<8x4xbf16>, vector<4x384xbf16>, vector<8x384xf32> -> vector<8x384xf32>
    %14 = arith.addf %9, %13 : vector<8x384xf32>
    %c0_17 = arith.constant 0 : index
    %c2 = arith.constant 2 : index
    %15 = vector.load %arg6[%c0_17, %c2] : memref<4x768xbf16, #tpu.memory_space<vmem>>, vector<4x384xbf16>
    %c2_18 = arith.constant 2 : index
    %c0_19 = arith.constant 0 : index
    %c0_20 = arith.constant 0 : index
    %16 = vector.load %arg3[%c2_18, %c0_19, %c0_20] : memref<9x8x4xbf16, #tpu.memory_space<vmem>>, vector<1x8x4xbf16>
    %17 = vector.shape_cast %16 : vector<1x8x4xbf16> to vector<8x4xbf16>
    %cst_21 = arith.constant dense<0.000000e+00> : vector<8x384xf32>
    %18 = tpu.matmul %17, %15, %cst_21 {dimension_numbers = #tpu.dot_dimension_numbers<[1], [0], [0], [1], [0, 0, 1, 1], [], []>} : vector<8x4xbf16>, vector<4x384xbf16>, vector<8x384xf32> -> vector<8x384xf32>
    %19 = arith.addf %14, %18 : vector<8x384xf32>
    %c0_22 = arith.constant 0 : index
    %c18 = arith.constant 18 : index
    %20 = vector.load %arg6[%c0_22, %c18] : memref<4x768xbf16, #tpu.memory_space<vmem>>, vector<4x384xbf16>
    %c3 = arith.constant 3 : index
    %c0_23 = arith.constant 0 : index
    %c0_24 = arith.constant 0 : index
    %21 = vector.load %arg3[%c3, %c0_23, %c0_24] : memref<9x8x4xbf16, #tpu.memory_space<vmem>>, vector<1x8x4xbf16>
    %22 = vector.shape_cast %21 : vector<1x8x4xbf16> to vector<8x4xbf16>
    %cst_25 = arith.constant dense<0.000000e+00> : vector<8x384xf32>
    %23 = tpu.matmul %22, %20, %cst_25 {dimension_numbers = #tpu.dot_dimension_numbers<[1], [0], [0], [1], [0, 0, 1, 1], [], []>} : vector<8x4xbf16>, vector<4x384xbf16>, vector<8x384xf32> -> vector<8x384xf32>
    %24 = arith.addf %19, %23 : vector<8x384xf32>
    %c0_26 = arith.constant 0 : index
    %c19 = arith.constant 19 : index
    %25 = vector.load %arg6[%c0_26, %c19] : memref<4x768xbf16, #tpu.memory_space<vmem>>, vector<4x384xbf16>
    %c4 = arith.constant 4 : index
    %c0_27 = arith.constant 0 : index
    %c0_28 = arith.constant 0 : index
    %26 = vector.load %arg3[%c4, %c0_27, %c0_28] : memref<9x8x4xbf16, #tpu.memory_space<vmem>>, vector<1x8x4xbf16>
    %27 = vector.shape_cast %26 : vector<1x8x4xbf16> to vector<8x4xbf16>
    %cst_29 = arith.constant dense<0.000000e+00> : vector<8x384xf32>
    %28 = tpu.matmul %27, %25, %cst_29 {dimension_numbers = #tpu.dot_dimension_numbers<[1], [0], [0], [1], [0, 0, 1, 1], [], []>} : vector<8x4xbf16>, vector<4x384xbf16>, vector<8x384xf32> -> vector<8x384xf32>
    %29 = arith.addf %24, %28 : vector<8x384xf32>
    %c0_30 = arith.constant 0 : index
    %c20 = arith.constant 20 : index
    %30 = vector.load %arg6[%c0_30, %c20] : memref<4x768xbf16, #tpu.memory_space<vmem>>, vector<4x384xbf16>
    %c5 = arith.constant 5 : index
    %c0_31 = arith.constant 0 : index
    %c0_32 = arith.constant 0 : index
    %31 = vector.load %arg3[%c5, %c0_31, %c0_32] : memref<9x8x4xbf16, #tpu.memory_space<vmem>>, vector<1x8x4xbf16>
    %32 = vector.shape_cast %31 : vector<1x8x4xbf16> to vector<8x4xbf16>
    %cst_33 = arith.constant dense<0.000000e+00> : vector<8x384xf32>
    %33 = tpu.matmul %32, %30, %cst_33 {dimension_numbers = #tpu.dot_dimension_numbers<[1], [0], [0], [1], [0, 0, 1, 1], [], []>} : vector<8x4xbf16>, vector<4x384xbf16>, vector<8x384xf32> -> vector<8x384xf32>
    %34 = arith.addf %29, %33 : vector<8x384xf32>
    %c0_34 = arith.constant 0 : index
    %c36 = arith.constant 36 : index
    %35 = vector.load %arg6[%c0_34, %c36] : memref<4x768xbf16, #tpu.memory_space<vmem>>, vector<4x384xbf16>
    %c6 = arith.constant 6 : index
    %c0_35 = arith.constant 0 : index
    %c0_36 = arith.constant 0 : index
    %36 = vector.load %arg3[%c6, %c0_35, %c0_36] : memref<9x8x4xbf16, #tpu.memory_space<vmem>>, vector<1x8x4xbf16>
    %37 = vector.shape_cast %36 : vector<1x8x4xbf16> to vector<8x4xbf16>
    %cst_37 = arith.constant dense<0.000000e+00> : vector<8x384xf32>
    %38 = tpu.matmul %37, %35, %cst_37 {dimension_numbers = #tpu.dot_dimension_numbers<[1], [0], [0], [1], [0, 0, 1, 1], [], []>} : vector<8x4xbf16>, vector<4x384xbf16>, vector<8x384xf32> -> vector<8x384xf32>
    %39 = arith.addf %34, %38 : vector<8x384xf32>
    %c0_38 = arith.constant 0 : index
    %c37 = arith.constant 37 : index
    %40 = vector.load %arg6[%c0_38, %c37] : memref<4x768xbf16, #tpu.memory_space<vmem>>, vector<4x384xbf16>
    %c7 = arith.constant 7 : index
    %c0_39 = arith.constant 0 : index
    %c0_40 = arith.constant 0 : index
    %41 = vector.load %arg3[%c7, %c0_39, %c0_40] : memref<9x8x4xbf16, #tpu.memory_space<vmem>>, vector<1x8x4xbf16>
    %42 = vector.shape_cast %41 : vector<1x8x4xbf16> to vector<8x4xbf16>
    %cst_41 = arith.constant dense<0.000000e+00> : vector<8x384xf32>
    %43 = tpu.matmul %42, %40, %cst_41 {dimension_numbers = #tpu.dot_dimension_numbers<[1], [0], [0], [1], [0, 0, 1, 1], [], []>} : vector<8x4xbf16>, vector<4x384xbf16>, vector<8x384xf32> -> vector<8x384xf32>
    %44 = arith.addf %39, %43 : vector<8x384xf32>
    %c0_42 = arith.constant 0 : index
    %c38 = arith.constant 38 : index
    %45 = vector.load %arg6[%c0_42, %c38] : memref<4x768xbf16, #tpu.memory_space<vmem>>, vector<4x384xbf16>
    %c8 = arith.constant 8 : index
    %c0_43 = arith.constant 0 : index
    %c0_44 = arith.constant 0 : index
    %46 = vector.load %arg3[%c8, %c0_43, %c0_44] : memref<9x8x4xbf16, #tpu.memory_space<vmem>>, vector<1x8x4xbf16>
    %47 = vector.shape_cast %46 : vector<1x8x4xbf16> to vector<8x4xbf16>
    %cst_45 = arith.constant dense<0.000000e+00> : vector<8x384xf32>
    %48 = tpu.matmul %47, %45, %cst_45 {dimension_numbers = #tpu.dot_dimension_numbers<[1], [0], [0], [1], [0, 0, 1, 1], [], []>} : vector<8x4xbf16>, vector<4x384xbf16>, vector<8x384xf32> -> vector<8x384xf32>
    %49 = arith.addf %44, %48 : vector<8x384xf32>
    %c0_46 = arith.constant 0 : index
    %c0_47 = arith.constant 0 : index
    %50 = vector.load %arg4[%c0_46, %c0_47] : memref<8x1xf32, #tpu.memory_space<vmem>>, vector<8x1xf32>
    %51 = vector.broadcast %50 : vector<8x1xf32> to vector<8x384xf32>
    %52 = arith.addf %49, %51 : vector<8x384xf32>
    %53 = arith.negf %52 : vector<8x384xf32>
    %54 = math.exp %53 : vector<8x384xf32>
    %cst_48 = arith.constant 1.000000e+00 : f32
    %55 = vector.broadcast %cst_48 : f32 to vector<8x384xf32>
    %56 = arith.addf %55, %54 : vector<8x384xf32>
    %57 = arith.divf %55, %56 : vector<8x384xf32>
    %58 = arith.mulf %52, %57 : vector<8x384xf32>
    %c0_49 = arith.constant 0 : index
    %c0_50 = arith.constant 0 : index
    %59 = vector.load %arg5[%c0_49, %c0_50] : memref<8x384xf32, #tpu.memory_space<vmem>>, vector<8x384xf32>
    tpu.vector_store %arg5[%c0_49, %c0_50], %58 {strides = array<i32>} : memref<8x384xf32, #tpu.memory_space<vmem>>, vector<8x384xf32>,
    return
  }
  func.func @transform_0(%arg0: i32) -> (i32, i32) {
    %c0_i32 = arith.constant 0 : i32
    %c0_i32_0 = arith.constant 0 : i32
    return %c0_i32, %arg0 : i32, i32
  }
  func.func @transform_1(%arg0: i32) -> (i32, i32) {
    %c1_i32 = arith.constant 1 : i32
    %0 = arith.addi %arg0, %c1_i32 : i32
    %c0_i32 = arith.constant 0 : i32
    %c0_i32_0 = arith.constant 0 : i32
    return %c0_i32, %0 : i32, i32
  }
  func.func @transform_2(%arg0: i32) -> (i32, i32, i32) {
    %c0_i32 = arith.constant 0 : i32
    %c0_i32_0 = arith.constant 0 : i32
    %c0_i32_1 = arith.constant 0 : i32
    %c0_i32_2 = arith.constant 0 : i32
    return %c0_i32, %c0_i32_0, %c0_i32_1 : i32, i32, i32
  }
  func.func @transform_3(%arg0: i32) -> (i32, i32) {
    %c0_i32 = arith.constant 0 : i32
    %c0_i32_0 = arith.constant 0 : i32
    %c0_i32_1 = arith.constant 0 : i32
    return %c0_i32, %c0_i32_0 : i32, i32
  }
  func.func @transform_4(%arg0: i32) -> (i32, i32) {
    %c0_i32 = arith.constant 0 : i32
    %c0_i32_0 = arith.constant 0 : i32
    return %c0_i32, %arg0 : i32, i32
  }
}

</mosaic_0001>

<llo_original>
// kernel: silu2d.1
$region0: #{silu2d.1}
  #allocation0 [shape = 'u32[]', space=smem, size = 0x4, offset = 0x4, fixed_abs, tag = 'smem constant byte address 0x4 - core index']
  #allocation1 [shape = 'u32[72,128]{1,0:T(1,128)}', space=vmem, size = 0x9000, scoped, tag = 'internal scratch']
  #allocation2 [shape = 'bf16[4,768]{1,0:T(4,128)(2,1)}', space=vmem, size = 0x1800, scoped, tag = 'scratch operand']
  %s0 = inlined_call_operand.vmem [shape: bf16[4,1152], index: 0, kind: input, shape index: {}, may-alias: {0,1}]
  %s1 = inlined_call_operand.vmem [shape: bf16[4,1152], index: 1, kind: input, shape index: {}, may-alias: {0,1}]
  %s2 = inlined_call_operand.vmem [shape: bf16[9,8,4], index: 2, kind: input, shape index: {}]
  %s3 = inlined_call_operand.vmem [shape: f32[8,1], index: 3, kind: input, shape index: {}]
  %s4 = inlined_call_operand.vmem [shape: f32[8,768], index: 4, kind: output, shape index: {}]
  %s5 = sld [smem:[#allocation0]]
  $region49: #{silu2d.1} parent=0
    _
  %s7 = ssub.s32 1, %s5
  %s8 = scalar_select 0, %s7, %s5
  loop: start=0, step=1, limit=4
  $region2: #{silu2d.1} parent=0 // loop_pre_header
    _
  $region3: #{silu2d.1} parent=0 // loop_header
    %s10 = sphi 0, %s14
    %p11 = scmp.ge.s32.totalorder %s10, 4
    %s20 = sphi 0, %s22
    %s23 = sphi 0, %s20
    %s24 = sphi 0, %s23
    %s40 = sphi 0, %s24
    %s48 = sphi 0, %s50
    %s51 = sphi 0, %s48
    %s52 = sphi 0, %s51
    %s68 = sphi 0, %s52
    %s72 = sphi 0, %s72
    %s74 = sphi 0, %s72
    %s75 = sphi 0, %s74
    %s89 = sphi 0, %s75
    %s93 = sphi 0, %s93
    %s95 = sphi 0, %s93
    %s96 = sphi 0, %s95
    %s110 = sphi 0, %s96
    %s116 = sphi 0, %s118
    %s119 = sphi 0, %s116
    %s120 = sphi 0, %s119
    %s136 = sphi 0, %s120
  $region4: #{silu2d.1} parent=0 // loop_header_branch
    %13 = sbr.rel (%p11) target = $region8
  $region5: #{silu2d.1} parent=0 // loop_body
    %s15 = ssub.s32 %s10, 1
    %s16 = ssub.s32 %s10, 2
    %s17 = sadd.s32 %s10, 1
    %s18 = ssub.s32 %s10, %s17
    %p19 = scmp.eq.s32.totalorder %s18, 0
    %s21 = sadd.s32 %s20, 1
    %s22 = scalar_select %p19, %s20, %s21
    %p25 = pneg %p19
    %p26 = scmp.eq.s32.totalorder %s10, 1
    %p27 = por %p25, %p26
    %p28 = scmp.ne.s32.totalorder %s20, %s23
    %p29 = scmp.eq.s32.totalorder %s10, 0
    %p30 = por %p28, %p29
    %p31 = scmp.ne.s32.totalorder %s20, %s23
    %p32 = scmp.eq.s32.totalorder %s15, 1
    %p33 = por %p31, %p32
    %p34 = scmp.ne.s32.totalorder %s23, %s24
    %p35 = scmp.eq.s32.totalorder %s15, 0
    %p36 = por %p34, %p35
    %p37 = scmp.ne.s32.totalorder %s23, %s24
    %p38 = scmp.eq.s32.totalorder %s16, 1
    %p39 = por %p37, %p38
    %p41 = scmp.ne.s32.totalorder %s24, %s40
    %p42 = scmp.eq.s32.totalorder %s16, 0
    %p43 = por %p41, %p42
    %s44 = sadd.s32 %s10, 1
    %s45 = sadd.s32 %s17, 1
    %s46 = ssub.s32 %s44, %s45
    %p47 = scmp.eq.s32.totalorder %s46, 0
    %s49 = sadd.s32 %s48, 1
    %s50 = scalar_select %p47, %s48, %s49
    %p53 = pneg %p47
    %p54 = scmp.eq.s32.totalorder %s10, 1
    %p55 = por %p53, %p54
    %p56 = scmp.ne.s32.totalorder %s48, %s51
    %p57 = scmp.eq.s32.totalorder %s10, 0
    %p58 = por %p56, %p57
    %p59 = scmp.ne.s32.totalorder %s48, %s51
    %p60 = scmp.eq.s32.totalorder %s15, 1
    %p61 = por %p59, %p60
    %p62 = scmp.ne.s32.totalorder %s51, %s52
    %p63 = scmp.eq.s32.totalorder %s15, 0
    %p64 = por %p62, %p63
    %p65 = scmp.ne.s32.totalorder %s51, %s52
    %p66 = scmp.eq.s32.totalorder %s16, 1
    %p67 = por %p65, %p66
    %p69 = scmp.ne.s32.totalorder %s52, %s68
    %p70 = scmp.eq.s32.totalorder %s16, 0
    %p71 = por %p69, %p70
    %s73 = sadd.s32 %s72, 1
    %p76 = scmp.eq.s32.totalorder %s10, 1
    %p77 = scmp.ne.s32.totalorder %s72, %s74
    %p78 = scmp.eq.s32.totalorder %s10, 0
    %p79 = por %p77, %p78
    %p80 = scmp.ne.s32.totalorder %s72, %s74
    %p81 = scmp.eq.s32.totalorder %s15, 1
    %p82 = por %p80, %p81
    %p83 = scmp.ne.s32.totalorder %s74, %s75
    %p84 = scmp.eq.s32.totalorder %s15, 0
    %p85 = por %p83, %p84
    %p86 = scmp.ne.s32.totalorder %s74, %s75
    %p87 = scmp.eq.s32.totalorder %s16, 1
    %p88 = por %p86, %p87
    %p90 = scmp.ne.s32.totalorder %s75, %s89
    %p91 = scmp.eq.s32.totalorder %s16, 0
    %p92 = por %p90, %p91
    %s94 = sadd.s32 %s93, 1
    %p97 = scmp.eq.s32.totalorder %s10, 1
    %p98 = scmp.ne.s32.totalorder %s93, %s95
    %p99 = scmp.eq.s32.totalorder %s10, 0
    %p100 = por %p98, %p99
    %p101 = scmp.ne.s32.totalorder %s93, %s95
    %p102 = scmp.eq.s32.totalorder %s15, 1
    %p103 = por %p101, %p102
    %p104 = scmp.ne.s32.totalorder %s95, %s96
    %p105 = scmp.eq.s32.totalorder %s15, 0
    %p106 = por %p104, %p105
    %p107 = scmp.ne.s32.totalorder %s95, %s96
    %p108 = scmp.eq.s32.totalorder %s16, 1
    %p109 = por %p107, %p108
    %p111 = scmp.ne.s32.totalorder %s96, %s110
    %p112 = scmp.eq.s32.totalorder %s16, 0
    %p113 = por %p111, %p112
    %s114 = ssub.s32 %s10, %s17
    %p115 = scmp.eq.s32.totalorder %s114, 0
    %s117 = sadd.s32 %s116, 1
    %s118 = scalar_select %p115, %s116, %s117
    %p121 = pneg %p115
    %p122 = scmp.eq.s32.totalorder %s10, 1
    %p123 = por %p121, %p122
    %p124 = scmp.ne.s32.totalorder %s116, %s119
    %p125 = scmp.eq.s32.totalorder %s10, 0
    %p126 = por %p124, %p125
    %p127 = scmp.ne.s32.totalorder %s116, %s119
    %p128 = scmp.eq.s32.totalorder %s15, 1
    %p129 = por %p127, %p128
    %p130 = scmp.ne.s32.totalorder %s119, %s120
    %p131 = scmp.eq.s32.totalorder %s15, 0
    %p132 = por %p130, %p131
    %p133 = scmp.ne.s32.totalorder %s119, %s120
    %p134 = scmp.eq.s32.totalorder %s16, 1
    %p135 = por %p133, %p134
    %p137 = scmp.ne.s32.totalorder %s120, %s136
    %p138 = scmp.eq.s32.totalorder %s16, 0
    %p139 = por %p137, %p138
    %p140 = scmp.le.s32.totalorder 1, %s10
    %p141 = scmp.lt.s32.totalorder %s10, 3
    %p142 = pnand %p140, %p141
    %p143 = pneg %p142
    // Predicated region
    $region9: #{silu2d.1} parent=5 // pred_check
      _
    $region10: #{silu2d.1} parent=5 // pred_check_branch
      %145 = sbr.rel (%p142) target = $region12
    $region11: #{silu2d.1} parent=5 // pred_region
      %s146 = ssub.s32 %s10, 1
      // Predicated region
      $region13: #{silu2d.1} parent=11 // pred_check
        %p147 = pneg %p85
      $region14: #{silu2d.1} parent=11 // pred_check_branch
        %149 = sbr.rel (%p147) target = $region16
      $region15: #{silu2d.1} parent=11 // pred_region
        _
      $region16: #{silu2d.1} parent=11 // pred_fallthru
        _
      // Predicated region
      $region17: #{silu2d.1} parent=11 // pred_check
        %p150 = pneg %p106
      $region18: #{silu2d.1} parent=11 // pred_check_branch
        %152 = sbr.rel (%p150) target = $region20
      $region19: #{silu2d.1} parent=11 // pred_region
        _
      $region20: #{silu2d.1} parent=11 // pred_fallthru
        _
    $region12: #{silu2d.1} parent=5 // pred_fallthru
      _
    %p153 = scmp.lt.s32.totalorder %s10, 2
    // Predicated region
    $region21: #{silu2d.1} parent=5 // pred_check
      %p154 = pneg %p153
    $region22: #{silu2d.1} parent=5 // pred_check_branch
      %156 = sbr.rel (%p154) target = $region24
    $region23: #{silu2d.1} parent=5 // pred_region
      // Predicated region
      $region25: #{silu2d.1} parent=23 // pred_check
        %p157 = pneg %p30
      $region26: #{silu2d.1} parent=23 // pred_check_branch
        %159 = sbr.rel (%p157) target = $region28
      $region27: #{silu2d.1} parent=23 // pred_region
        %s160 = smul.u32 3, %s10
        %p161 = scmp.lt.s32.totalorder %s160, 8
        %s162 = scalar_select %p161, %s160, 8
        %s163 = smul.addr %s162, 2
        %s164 = scalar_lea.vmem %s0, %s163
        %s165 = smul.u32 3, %s10
      $region28: #{silu2d.1} parent=23 // pred_fallthru
        _
      // Predicated region
      $region29: #{silu2d.1} parent=23 // pred_check
        %p166 = pneg %p58
      $region30: #{silu2d.1} parent=23 // pred_check_branch
        %168 = sbr.rel (%p166) target = $region32
      $region31: #{silu2d.1} parent=23 // pred_region
        %s169 = sadd.s32 %s10, 1
        %s170 = smul.u32 3, %s169
        %p171 = scmp.lt.s32.totalorder %s170, 8
        %s172 = scalar_select %p171, %s170, 8
        %s173 = smul.addr %s172, 2
        %s174 = scalar_lea.vmem %s1, %s173
        %s175 = sadd.s32 %s10, 1
        %s176 = smul.u32 3, %s175
      $region32: #{silu2d.1} parent=23 // pred_fallthru
        _
    $region24: #{silu2d.1} parent=5 // pred_fallthru
      _
    %p177 = scmp.le.s32.totalorder 1, %s10
    %p178 = scmp.lt.s32.totalorder %s10, 3
    %p179 = pnand %p177, %p178
    %p180 = pneg %p179
    // Predicated region
    $region33: #{silu2d.1} parent=5 // pred_check
      _
    $region34: #{silu2d.1} parent=5 // pred_check_branch
      %182 = sbr.rel (%p179) target = $region36
    $region35: #{silu2d.1} parent=5 // pred_region
      %s183 = ssub.s32 %s10, 1
      %s184 = smul.u32 3, %s15
      %p185 = scmp.lt.s32.totalorder %s184, 8
      %s186 = scalar_select %p185, %s184, 8
      %s187 = smul.addr %s186, 2
      %s188 = scalar_lea.vmem %s0, %s187
      %p189 = pneg %p36
      %p190 = pneg %p33
      %s191 = sadd.s32 %s15, 1
      %s192 = smul.u32 3, %s191
      %p193 = scmp.lt.s32.totalorder %s192, 8
      %s194 = scalar_select %p193, %s192, 8
      %s195 = smul.addr %s194, 2
      %s196 = scalar_lea.vmem %s1, %s195
      %p197 = pneg %p64
      %p198 = pneg %p61
      %p199 = pneg %p85
      %p200 = pneg %p82
      %p201 = pneg %p106
      %p202 = pneg %p103
      %p203 = pneg %p132
      %p204 = pneg %p129
      %s205 = smul.u32 3, %s15
      %p206 = scmp.lt.s32.totalorder %s205, 5
      %s207 = scalar_select %p206, %s205, 5
      %s208 = smul.addr %s207, 8
      %s209 = scalar_lea.vmem %s4, %s208
      %s210 = smul.u32 3, %s15
      %p211 = scmp.lt.s32.totalorder %s210, 8
      %s212 = scalar_select %p211, %s210, 8
      %s213 = smul.addr %s212, 2
      %s214 = scalar_lea.vmem %s0, %s213
      %s215 = smul.u32 3, %s15
      %s216 = sadd.s32 %s15, 1
      %s217 = smul.u32 3, %s216
      %p218 = scmp.lt.s32.totalorder %s217, 8
      %s219 = scalar_select %p218, %s217, 8
      %s220 = smul.addr %s219, 2
      %s221 = scalar_lea.vmem %s1, %s220
      %s222 = sadd.s32 %s15, 1
      %s223 = smul.u32 3, %s222
      %s224 = smul.u32 3, %s15
      %p225 = scmp.lt.s32.totalorder %s224, 5
      %s226 = scalar_select %p225, %s224, 5
      %s227 = smul.addr %s226, 8
      %s228 = scalar_lea.vmem %s4, %s227
      %s229 = smul.u32 3, %s15
      %v231 = vld [vmem:[%s214] sm:$0x3f]
      %232 = vst [vmem:[#allocation2] sm:$0x3f] %v231
      %v233 = vld [vmem:[%s221] sm:$0x3f]
      %234 = vst [vmem:[#allocation2 + $0x6] sm:$0x3f] %v233
      %v235 = vld [vmem:[#allocation2] sm:$0x3f]
      %v236 = vld [vmem:[%s2] sm:$0xf]
      %v237 = vld [vmem:[#allocation2] sm:$0xff]
      %s238 = scalar_lea.vmem %s2, 4
      %v239 = vld [vmem:[%s238] sm:$0xf]
      %241 = vst [vmem:[#allocation1] ss:$4 sm:$0xff] %v237
      %v242 = vld.sshfl [vmem:[#allocation1] sm:$0xff pattern:$0x73625140]
      %v244 = vld.sshfl [vmem:[#allocation1 + $0x8] sm:$0xff pattern:$0x73625140]
      %v246 = vld.sshfl [vmem:[#allocation1 + $0x10] sm:$0xff pattern:$0x73625140]
      %v248 = vld.sshfl [vmem:[#allocation1 + $0x18] sm:$0xff pattern:$0x73625140]
      %250 = vrot.lane.b32.xlu0 %v242, 127
      %v251 = vpop.permute.xlu0 %250
      %252 = vrot.lane.b32.xlu0 %v244, 127
      %v253 = vpop.permute.xlu0 %252
      %254 = vrot.lane.b32.xlu0 %v246, 127
      %v255 = vpop.permute.xlu0 %254
      %256 = vrot.lane.b32.xlu0 %v248, 127
      %v257 = vpop.permute.xlu0 %256
      %vm258 = vcmask 1039360
      %v259 = vsel %vm258, %v251, %v253
      %v260 = vsel %vm258, %v253, %v255
      %v261 = vsel %vm258, %v255, %v257
      %vm262 = vcmask 31744
      %v264 = vsel %vm262, %v239, 0
      %vm266 = vcmask 1041408
      %v268 = vsel %vm266, %v259, 0
      %v271 = vsel %vm266, %v260, 0
      %v274 = vsel %vm266, %v261, 0
      %276 = vmatpush.bf16.msra.mxu0 0
      %277 = vmatpush.bf16.msra.mxu0 0
      %278 = vmatpush.bf16.msra.mxu0 0
      %279 = vmatpush.bf16.msra.mxu0 0
      %280 = vmatpush.bf16.msra.mxu0 0
      %281 = vmatpush.bf16.msra.mxu0 0
      %282 = vmatpush.bf16.msra.mxu0 0
      %283 = vmatpush.bf16.msra.mxu0 %v268
      %284 = vmatmul.bf16.gmra.mxu0 %v264
      %v285 = vpop.f32.mrf.mxu0
      %v286 = vadd.f32 0.0, %v285
      %v287 = vpop.f32.mrf.mxu0
      %288 = vdwg.mxu0
      %289 = vmatpush.bf16.msra.mxu0 0
      %290 = vmatpush.bf16.msra.mxu0 0
      %291 = vmatpush.bf16.msra.mxu0 0
      %292 = vmatpush.bf16.msra.mxu0 0
      %293 = vmatpush.bf16.msra.mxu0 0
      %294 = vmatpush.bf16.msra.mxu0 0
      %295 = vmatpush.bf16.msra.mxu0 0
      %296 = vmatpush.bf16.msra.mxu0 %v271
      %297 = vmatmul.bf16.gmra.mxu0 %v264
      %v298 = vpop.f32.mrf.mxu0
      %v299 = vadd.f32 0.0, %v298
      %v300 = vpop.f32.mrf.mxu0
      %301 = vdwg.mxu0
      %302 = vmatpush.bf16.msra.mxu0 0
      %303 = vmatpush.bf16.msra.mxu0 0
      %304 = vmatpush.bf16.msra.mxu0 0
      %305 = vmatpush.bf16.msra.mxu0 0
      %306 = vmatpush.bf16.msra.mxu0 0
      %307 = vmatpush.bf16.msra.mxu0 0
      %308 = vmatpush.bf16.msra.mxu0 0
      %309 = vmatpush.bf16.msra.mxu0 %v274
      %310 = vmatmul.bf16.gmra.mxu0 %v264
      %v311 = vpop.f32.mrf.mxu0
      %v312 = vadd.f32 0.0, %v311
      %v313 = vpop.f32.mrf.mxu0
      %314 = vdwg.mxu0
      %316 = vst [vmem:[#allocation1] ss:$4 sm:$0xff] %v235
      %v317 = vld.sshfl [vmem:[#allocation1] sm:$0xff pattern:$0x73625140]
      %v318 = vld.sshfl [vmem:[#allocation1 + $0x8] sm:$0xff pattern:$0x73625140]
      %v319 = vld.sshfl [vmem:[#allocation1 + $0x10] sm:$0xff pattern:$0x73625140]
      %v321 = vsel %vm262, %v236, 0
      %v323 = vsel %vm266, %v317, 0
      %v325 = vsel %vm266, %v318, 0
      %v327 = vsel %vm266, %v319, 0
      %329 = vmatpush.bf16.msra.mxu0 0
      %330 = vmatpush.bf16.msra.mxu0 0
      %331 = vmatpush.bf16.msra.mxu0 0
      %332 = vmatpush.bf16.msra.mxu0 0
      %333 = vmatpush.bf16.msra.mxu0 0
      %334 = vmatpush.bf16.msra.mxu0 0
      %335 = vmatpush.bf16.msra.mxu0 0
      %336 = vmatpush.bf16.msra.mxu0 %v323
      %337 = vmatmul.bf16.gmra.mxu0 %v321
      %v338 = vpop.f32.mrf.mxu0
      %v339 = vadd.f32 %v286, %v338
      %v340 = vpop.f32.mrf.mxu0
      %341 = vdwg.mxu0
      %342 = vmatpush.bf16.msra.mxu0 0
      %343 = vmatpush.bf16.msra.mxu0 0
      %344 = vmatpush.bf16.msra.mxu0 0
      %345 = vmatpush.bf16.msra.mxu0 0
      %346 = vmatpush.bf16.msra.mxu0 0
      %347 = vmatpush.bf16.msra.mxu0 0
      %348 = vmatpush.bf16.msra.mxu0 0
      %349 = vmatpush.bf16.msra.mxu0 %v325
      %350 = vmatmul.bf16.gmra.mxu0 %v321
      %v351 = vpop.f32.mrf.mxu0
      %v352 = vadd.f32 %v299, %v351
      %v353 = vpop.f32.mrf.mxu0
      %354 = vdwg.mxu0
      %355 = vmatpush.bf16.msra.mxu0 0
      %356 = vmatpush.bf16.msra.mxu0 0
      %357 = vmatpush.bf16.msra.mxu0 0
      %358 = vmatpush.bf16.msra.mxu0 0
      %359 = vmatpush.bf16.msra.mxu0 0
      %360 = vmatpush.bf16.msra.mxu0 0
      %361 = vmatpush.bf16.msra.mxu0 0
      %362 = vmatpush.bf16.msra.mxu0 %v327
      %363 = vmatmul.bf16.gmra.mxu0 %v321
      %v364 = vpop.f32.mrf.mxu0
      %v365 = vadd.f32 %v312, %v364
      %v366 = vpop.f32.mrf.mxu0
      %367 = vdwg.mxu0
      %v368 = vld [vmem:[#allocation2] sm:$0xff]
      %s369 = scalar_lea.vmem %s2, 8
      %v370 = vld [vmem:[%s369] sm:$0xf]
      %372 = vst [vmem:[#allocation1] ss:$4 sm:$0xff] %v368
      %v373 = vld.sshfl [vmem:[#allocation1] sm:$0xff pattern:$0x73625140]
      %v375 = vld.sshfl [vmem:[#allocation1 + $0x8] sm:$0xff pattern:$0x73625140]
      %v377 = vld.sshfl [vmem:[#allocation1 + $0x10] sm:$0xff pattern:$0x73625140]
      %v379 = vld.sshfl [vmem:[#allocation1 + $0x18] sm:$0xff pattern:$0x73625140]
      %381 = vrot.lane.b32.xlu0 %v373, 126
      %v382 = vpop.permute.xlu0 %381
      %383 = vrot.lane.b32.xlu0 %v375, 126
      %v384 = vpop.permute.xlu0 %383
      %385 = vrot.lane.b32.xlu0 %v377, 126
      %v386 = vpop.permute.xlu0 %385
      %387 = vrot.lane.b32.xlu0 %v379, 126
      %v388 = vpop.permute.xlu0 %387
      %vm389 = vcmask 1031168
      %v390 = vsel %vm389, %v382, %v384
      %v391 = vsel %vm389, %v384, %v386
      %v392 = vsel %vm389, %v386, %v388
      %v394 = vsel %vm262, %v370, 0
      %v397 = vsel %vm266, %v390, 0
      %v400 = vsel %vm266, %v391, 0
      %v403 = vsel %vm266, %v392, 0
      %405 = vmatpush.bf16.msra.mxu0 0
      %406 = vmatpush.bf16.msra.mxu0 0
      %407 = vmatpush.bf16.msra.mxu0 0
      %408 = vmatpush.bf16.msra.mxu0 0
      %409 = vmatpush.bf16.msra.mxu0 0
      %410 = vmatpush.bf16.msra.mxu0 0
      %411 = vmatpush.bf16.msra.mxu0 0
      %412 = vmatpush.bf16.msra.mxu0 %v397
      %413 = vmatmul.bf16.gmra.mxu0 %v394
      %v414 = vpop.f32.mrf.mxu0
      %v415 = vadd.f32 0.0, %v414
      %v416 = vpop.f32.mrf.mxu0
      %417 = vdwg.mxu0
      %418 = vmatpush.bf16.msra.mxu0 0
      %419 = vmatpush.bf16.msra.mxu0 0
      %420 = vmatpush.bf16.msra.mxu0 0
      %421 = vmatpush.bf16.msra.mxu0 0
      %422 = vmatpush.bf16.msra.mxu0 0
      %423 = vmatpush.bf16.msra.mxu0 0
      %424 = vmatpush.bf16.msra.mxu0 0
      %425 = vmatpush.bf16.msra.mxu0 %v400
      %426 = vmatmul.bf16.gmra.mxu0 %v394
      %v427 = vpop.f32.mrf.mxu0
      %v428 = vadd.f32 0.0, %v427
      %v429 = vpop.f32.mrf.mxu0
      %430 = vdwg.mxu0
      %431 = vmatpush.bf16.msra.mxu0 0
      %432 = vmatpush.bf16.msra.mxu0 0
      %433 = vmatpush.bf16.msra.mxu0 0
      %434 = vmatpush.bf16.msra.mxu0 0
      %435 = vmatpush.bf16.msra.mxu0 0
      %436 = vmatpush.bf16.msra.mxu0 0
      %437 = vmatpush.bf16.msra.mxu0 0
      %438 = vmatpush.bf16.msra.mxu0 %v403
      %439 = vmatmul.bf16.gmra.mxu0 %v394
      %v440 = vpop.f32.mrf.mxu0
      %v441 = vadd.f32 0.0, %v440
      %v442 = vpop.f32.mrf.mxu0
      %443 = vdwg.mxu0
      %v444 = vadd.f32 %v339, %v415
      %v445 = vadd.f32 %v352, %v428
      %v446 = vadd.f32 %v365, %v441
      %v447 = vld [vmem:[#allocation2] sm:$0xff]
      %s448 = scalar_lea.vmem %s2, 12
      %v449 = vld [vmem:[%s448] sm:$0xf]
      %451 = vst [vmem:[#allocation1] ss:$4 sm:$0xff] %v447
      %v452 = vld.sshfl [vmem:[#allocation1] sm:$0xff pattern:$0x73625140]
      %v454 = vld.sshfl [vmem:[#allocation1 + $0x8] sm:$0xff pattern:$0x73625140]
      %v456 = vld.sshfl [vmem:[#allocation1 + $0x10] sm:$0xff pattern:$0x73625140]
      %v458 = vld.sshfl [vmem:[#allocation1 + $0x18] sm:$0xff pattern:$0x73625140]
      %460 = vrot.lane.b32.xlu0 %v452, 110
      %v461 = vpop.permute.xlu0 %460
      %462 = vrot.lane.b32.xlu0 %v454, 110
      %v463 = vpop.permute.xlu0 %462
      %464 = vrot.lane.b32.xlu0 %v456, 110
      %v465 = vpop.permute.xlu0 %464
      %466 = vrot.lane.b32.xlu0 %v458, 110
      %v467 = vpop.permute.xlu0 %466
      %vm468 = vcmask 900096
      %v469 = vsel %vm468, %v461, %v463
      %v470 = vsel %vm468, %v463, %v465
      %v471 = vsel %vm468, %v465, %v467
      %v473 = vsel %vm262, %v449, 0
      %v476 = vsel %vm266, %v469, 0
      %v479 = vsel %vm266, %v470, 0
      %v482 = vsel %vm266, %v471, 0
      %484 = vmatpush.bf16.msra.mxu0 0
      %485 = vmatpush.bf16.msra.mxu0 0
      %486 = vmatpush.bf16.msra.mxu0 0
      %487 = vmatpush.bf16.msra.mxu0 0
      %488 = vmatpush.bf16.msra.mxu0 0
      %489 = vmatpush.bf16.msra.mxu0 0
      %490 = vmatpush.bf16.msra.mxu0 0
      %491 = vmatpush.bf16.msra.mxu0 %v476
      %492 = vmatmul.bf16.gmra.mxu0 %v473
      %v493 = vpop.f32.mrf.mxu0
      %v494 = vadd.f32 0.0, %v493
      %v495 = vpop.f32.mrf.mxu0
      %496 = vdwg.mxu0
      %497 = vmatpush.bf16.msra.mxu0 0
      %498 = vmatpush.bf16.msra.mxu0 0
      %499 = vmatpush.bf16.msra.mxu0 0
      %500 = vmatpush.bf16.msra.mxu0 0
      %501 = vmatpush.bf16.msra.mxu0 0
      %502 = vmatpush.bf16.msra.mxu0 0
      %503 = vmatpush.bf16.msra.mxu0 0
      %504 = vmatpush.bf16.msra.mxu0 %v479
      %505 = vmatmul.bf16.gmra.mxu0 %v473
      %v506 = vpop.f32.mrf.mxu0
      %v507 = vadd.f32 0.0, %v506
      %v508 = vpop.f32.mrf.mxu0
      %509 = vdwg.mxu0
      %510 = vmatpush.bf16.msra.mxu0 0
      %511 = vmatpush.bf16.msra.mxu0 0
      %512 = vmatpush.bf16.msra.mxu0 0
      %513 = vmatpush.bf16.msra.mxu0 0
      %514 = vmatpush.bf16.msra.mxu0 0
      %515 = vmatpush.bf16.msra.mxu0 0
      %516 = vmatpush.bf16.msra.mxu0 0
      %517 = vmatpush.bf16.msra.mxu0 %v482
      %518 = vmatmul.bf16.gmra.mxu0 %v473
      %v519 = vpop.f32.mrf.mxu0
      %v520 = vadd.f32 0.0, %v519
      %v521 = vpop.f32.mrf.mxu0
      %522 = vdwg.mxu0
      %v523 = vadd.f32 %v444, %v494
      %v524 = vadd.f32 %v445, %v507
      %v525 = vadd.f32 %v446, %v520
      %v526 = vld [vmem:[#allocation2] sm:$0xff]
      %s527 = scalar_lea.vmem %s2, 16
      %v528 = vld [vmem:[%s527] sm:$0xf]
      %530 = vst [vmem:[#allocation1] ss:$4 sm:$0xff] %v526
      %v531 = vld.sshfl [vmem:[#allocation1] sm:$0xff pattern:$0x73625140]
      %v533 = vld.sshfl [vmem:[#allocation1 + $0x8] sm:$0xff pattern:$0x73625140]
      %v535 = vld.sshfl [vmem:[#allocation1 + $0x10] sm:$0xff pattern:$0x73625140]
      %v537 = vld.sshfl [vmem:[#allocation1 + $0x18] sm:$0xff pattern:$0x73625140]
      %539 = vrot.lane.b32.xlu0 %v531, 109
      %v540 = vpop.permute.xlu0 %539
      %541 = vrot.lane.b32.xlu0 %v533, 109
      %v542 = vpop.permute.xlu0 %541
      %543 = vrot.lane.b32.xlu0 %v535, 109
      %v544 = vpop.permute.xlu0 %543
      %545 = vrot.lane.b32.xlu0 %v537, 109
      %v546 = vpop.permute.xlu0 %545
      %vm547 = vcmask 891904
      %v548 = vsel %vm547, %v540, %v542
      %v549 = vsel %vm547, %v542, %v544
      %v550 = vsel %vm547, %v544, %v546
      %v552 = vsel %vm262, %v528, 0
      %v555 = vsel %vm266, %v548, 0
      %v558 = vsel %vm266, %v549, 0
      %v561 = vsel %vm266, %v550, 0
      %563 = vmatpush.bf16.msra.mxu0 0
      %564 = vmatpush.bf16.msra.mxu0 0
      %565 = vmatpush.bf16.msra.mxu0 0
      %566 = vmatpush.bf16.msra.mxu0 0
      %567 = vmatpush.bf16.msra.mxu0 0
      %568 = vmatpush.bf16.msra.mxu0 0
      %569 = vmatpush.bf16.msra.mxu0 0
      %570 = vmatpush.bf16.msra.mxu0 %v555
      %571 = vmatmul.bf16.gmra.mxu0 %v552
      %v572 = vpop.f32.mrf.mxu0
      %v573 = vadd.f32 0.0, %v572
      %v574 = vpop.f32.mrf.mxu0
      %575 = vdwg.mxu0
      %576 = vmatpush.bf16.msra.mxu0 0
      %577 = vmatpush.bf16.msra.mxu0 0
      %578 = vmatpush.bf16.msra.mxu0 0
      %579 = vmatpush.bf16.msra.mxu0 0
      %580 = vmatpush.bf16.msra.mxu0 0
      %581 = vmatpush.bf16.msra.mxu0 0
      %582 = vmatpush.bf16.msra.mxu0 0
      %583 = vmatpush.bf16.msra.mxu0 %v558
      %584 = vmatmul.bf16.gmra.mxu0 %v552
      %v585 = vpop.f32.mrf.mxu0
      %v586 = vadd.f32 0.0, %v585
      %v587 = vpop.f32.mrf.mxu0
      %588 = vdwg.mxu0
      %589 = vmatpush.bf16.msra.mxu0 0
      %590 = vmatpush.bf16.msra.mxu0 0
      %591 = vmatpush.bf16.msra.mxu0 0
      %592 = vmatpush.bf16.msra.mxu0 0
      %593 = vmatpush.bf16.msra.mxu0 0
      %594 = vmatpush.bf16.msra.mxu0 0
      %595 = vmatpush.bf16.msra.mxu0 0
      %596 = vmatpush.bf16.msra.mxu0 %v561
      %597 = vmatmul.bf16.gmra.mxu0 %v552
      %v598 = vpop.f32.mrf.mxu0
      %v599 = vadd.f32 0.0, %v598
      %v600 = vpop.f32.mrf.mxu0
      %601 = vdwg.mxu0
      %v602 = vadd.f32 %v523, %v573
      %v603 = vadd.f32 %v524, %v586
      %v604 = vadd.f32 %v525, %v599
      %v605 = vld [vmem:[#allocation2] sm:$0xff]
      %s606 = scalar_lea.vmem %s2, 20
      %v607 = vld [vmem:[%s606] sm:$0xf]
      %609 = vst [vmem:[#allocation1] ss:$4 sm:$0xff] %v605
      %v610 = vld.sshfl [vmem:[#allocation1] sm:$0xff pattern:$0x73625140]
      %v612 = vld.sshfl [vmem:[#allocation1 + $0x8] sm:$0xff pattern:$0x73625140]
      %v614 = vld.sshfl [vmem:[#allocation1 + $0x10] sm:$0xff pattern:$0x73625140]
      %v616 = vld.sshfl [vmem:[#allocation1 + $0x18] sm:$0xff pattern:$0x73625140]
      %618 = vrot.lane.b32.xlu0 %v610, 108
      %v619 = vpop.permute.xlu0 %618
      %620 = vrot.lane.b32.xlu0 %v612, 108
      %v621 = vpop.permute.xlu0 %620
      %622 = vrot.lane.b32.xlu0 %v614, 108
      %v623 = vpop.permute.xlu0 %622
      %624 = vrot.lane.b32.xlu0 %v616, 108
      %v625 = vpop.permute.xlu0 %624
      %vm626 = vcmask 883712
      %v627 = vsel %vm626, %v619, %v621
      %v628 = vsel %vm626, %v621, %v623
      %v629 = vsel %vm626, %v623, %v625
      %v631 = vsel %vm262, %v607, 0
      %v634 = vsel %vm266, %v627, 0
      %v637 = vsel %vm266, %v628, 0
      %v640 = vsel %vm266, %v629, 0
      %642 = vmatpush.bf16.msra.mxu0 0
      %643 = vmatpush.bf16.msra.mxu0 0
      %644 = vmatpush.bf16.msra.mxu0 0
      %645 = vmatpush.bf16.msra.mxu0 0
      %646 = vmatpush.bf16.msra.mxu0 0
      %647 = vmatpush.bf16.msra.mxu0 0
      %648 = vmatpush.bf16.msra.mxu0 0
      %649 = vmatpush.bf16.msra.mxu0 %v634
      %650 = vmatmul.bf16.gmra.mxu0 %v631
      %v651 = vpop.f32.mrf.mxu0
      %v652 = vadd.f32 0.0, %v651
      %v653 = vpop.f32.mrf.mxu0
      %654 = vdwg.mxu0
      %655 = vmatpush.bf16.msra.mxu0 0
      %656 = vmatpush.bf16.msra.mxu0 0
      %657 = vmatpush.bf16.msra.mxu0 0
      %658 = vmatpush.bf16.msra.mxu0 0
      %659 = vmatpush.bf16.msra.mxu0 0
      %660 = vmatpush.bf16.msra.mxu0 0
      %661 = vmatpush.bf16.msra.mxu0 0
      %662 = vmatpush.bf16.msra.mxu0 %v637
      %663 = vmatmul.bf16.gmra.mxu0 %v631
      %v664 = vpop.f32.mrf.mxu0
      %v665 = vadd.f32 0.0, %v664
      %v666 = vpop.f32.mrf.mxu0
      %667 = vdwg.mxu0
      %668 = vmatpush.bf16.msra.mxu0 0
      %669 = vmatpush.bf16.msra.mxu0 0
      %670 = vmatpush.bf16.msra.mxu0 0
      %671 = vmatpush.bf16.msra.mxu0 0
      %672 = vmatpush.bf16.msra.mxu0 0
      %673 = vmatpush.bf16.msra.mxu0 0
      %674 = vmatpush.bf16.msra.mxu0 0
      %675 = vmatpush.bf16.msra.mxu0 %v640
      %676 = vmatmul.bf16.gmra.mxu0 %v631
      %v677 = vpop.f32.mrf.mxu0
      %v678 = vadd.f32 0.0, %v677
      %v679 = vpop.f32.mrf.mxu0
      %680 = vdwg.mxu0
      %v681 = vadd.f32 %v602, %v652
      %v682 = vadd.f32 %v603, %v665
      %v683 = vadd.f32 %v604, %v678
      %v684 = vld [vmem:[#allocation2] sm:$0xff]
      %s685 = scalar_lea.vmem %s2, 24
      %v686 = vld [vmem:[%s685] sm:$0xf]
      %688 = vst [vmem:[#allocation1] ss:$4 sm:$0xff] %v684
      %v689 = vld.sshfl [vmem:[#allocation1] sm:$0xff pattern:$0x73625140]
      %v691 = vld.sshfl [vmem:[#allocation1 + $0x8] sm:$0xff pattern:$0x73625140]
      %v693 = vld.sshfl [vmem:[#allocation1 + $0x10] sm:$0xff pattern:$0x73625140]
      %v695 = vld.sshfl [vmem:[#allocation1 + $0x18] sm:$0xff pattern:$0x73625140]
      %697 = vrot.lane.b32.xlu0 %v689, 92
      %v698 = vpop.permute.xlu0 %697
      %699 = vrot.lane.b32.xlu0 %v691, 92
      %v700 = vpop.permute.xlu0 %699
      %701 = vrot.lane.b32.xlu0 %v693, 92
      %v702 = vpop.permute.xlu0 %701
      %703 = vrot.lane.b32.xlu0 %v695, 92
      %v704 = vpop.permute.xlu0 %703
      %vm705 = vcmask 752640
      %v706 = vsel %vm705, %v698, %v700
      %v707 = vsel %vm705, %v700, %v702
      %v708 = vsel %vm705, %v702, %v704
      %v710 = vsel %vm262, %v686, 0
      %v713 = vsel %vm266, %v706, 0
      %v716 = vsel %vm266, %v707, 0
      %v719 = vsel %vm266, %v708, 0
      %721 = vmatpush.bf16.msra.mxu0 0
      %722 = vmatpush.bf16.msra.mxu0 0
      %723 = vmatpush.bf16.msra.mxu0 0
      %724 = vmatpush.bf16.msra.mxu0 0
      %725 = vmatpush.bf16.msra.mxu0 0
      %726 = vmatpush.bf16.msra.mxu0 0
      %727 = vmatpush.bf16.msra.mxu0 0
      %728 = vmatpush.bf16.msra.mxu0 %v713
      %729 = vmatmul.bf16.gmra.mxu0 %v710
      %v730 = vpop.f32.mrf.mxu0
      %v731 = vadd.f32 0.0, %v730
      %v732 = vpop.f32.mrf.mxu0
      %733 = vdwg.mxu0
      %734 = vmatpush.bf16.msra.mxu0 0
      %735 = vmatpush.bf16.msra.mxu0 0
      %736 = vmatpush.bf16.msra.mxu0 0
      %737 = vmatpush.bf16.msra.mxu0 0
      %738 = vmatpush.bf16.msra.mxu0 0
      %739 = vmatpush.bf16.msra.mxu0 0
      %740 = vmatpush.bf16.msra.mxu0 0
      %741 = vmatpush.bf16.msra.mxu0 %v716
      %742 = vmatmul.bf16.gmra.mxu0 %v710
      %v743 = vpop.f32.mrf.mxu0
      %v744 = vadd.f32 0.0, %v743
      %v745 = vpop.f32.mrf.mxu0
      %746 = vdwg.mxu0
      %747 = vmatpush.bf16.msra.mxu0 0
      %748 = vmatpush.bf16.msra.mxu0 0
      %749 = vmatpush.bf16.msra.mxu0 0
      %750 = vmatpush.bf16.msra.mxu0 0
      %751 = vmatpush.bf16.msra.mxu0 0
      %752 = vmatpush.bf16.msra.mxu0 0
      %753 = vmatpush.bf16.msra.mxu0 0
      %754 = vmatpush.bf16.msra.mxu0 %v719
      %755 = vmatmul.bf16.gmra.mxu0 %v710
      %v756 = vpop.f32.mrf.mxu0
      %v757 = vadd.f32 0.0, %v756
      %v758 = vpop.f32.mrf.mxu0
      %759 = vdwg.mxu0
      %v760 = vadd.f32 %v681, %v731
      %v761 = vadd.f32 %v682, %v744
      %v762 = vadd.f32 %v683, %v757
      %v763 = vld [vmem:[#allocation2] sm:$0xff]
      %s764 = scalar_lea.vmem %s2, 28
      %v765 = vld [vmem:[%s764] sm:$0xf]
      %767 = vst [vmem:[#allocation1] ss:$4 sm:$0xff] %v763
      %v768 = vld.sshfl [vmem:[#allocation1] sm:$0xff pattern:$0x73625140]
      %v770 = vld.sshfl [vmem:[#allocation1 + $0x8] sm:$0xff pattern:$0x73625140]
      %v772 = vld.sshfl [vmem:[#allocation1 + $0x10] sm:$0xff pattern:$0x73625140]
      %v774 = vld.sshfl [vmem:[#allocation1 + $0x18] sm:$0xff pattern:$0x73625140]
      %776 = vrot.lane.b32.xlu0 %v768, 91
      %v777 = vpop.permute.xlu0 %776
      %778 = vrot.lane.b32.xlu0 %v770, 91
      %v779 = vpop.permute.xlu0 %778
      %780 = vrot.lane.b32.xlu0 %v772, 91
      %v781 = vpop.permute.xlu0 %780
      %782 = vrot.lane.b32.xlu0 %v774, 91
      %v783 = vpop.permute.xlu0 %782
      %vm784 = vcmask 744448
      %v785 = vsel %vm784, %v777, %v779
      %v786 = vsel %vm784, %v779, %v781
      %v787 = vsel %vm784, %v781, %v783
      %v789 = vsel %vm262, %v765, 0
      %v792 = vsel %vm266, %v785, 0
      %v795 = vsel %vm266, %v786, 0
      %v798 = vsel %vm266, %v787, 0
      %800 = vmatpush.bf16.msra.mxu0 0
      %801 = vmatpush.bf16.msra.mxu0 0
      %802 = vmatpush.bf16.msra.mxu0 0
      %803 = vmatpush.bf16.msra.mxu0 0
      %804 = vmatpush.bf16.msra.mxu0 0
      %805 = vmatpush.bf16.msra.mxu0 0
      %806 = vmatpush.bf16.msra.mxu0 0
      %807 = vmatpush.bf16.msra.mxu0 %v792
      %808 = vmatmul.bf16.gmra.mxu0 %v789
      %v809 = vpop.f32.mrf.mxu0
      %v810 = vadd.f32 0.0, %v809
      %v811 = vpop.f32.mrf.mxu0
      %812 = vdwg.mxu0
      %813 = vmatpush.bf16.msra.mxu0 0
      %814 = vmatpush.bf16.msra.mxu0 0
      %815 = vmatpush.bf16.msra.mxu0 0
      %816 = vmatpush.bf16.msra.mxu0 0
      %817 = vmatpush.bf16.msra.mxu0 0
      %818 = vmatpush.bf16.msra.mxu0 0
      %819 = vmatpush.bf16.msra.mxu0 0
      %820 = vmatpush.bf16.msra.mxu0 %v795
      %821 = vmatmul.bf16.gmra.mxu0 %v789
      %v822 = vpop.f32.mrf.mxu0
      %v823 = vadd.f32 0.0, %v822
      %v824 = vpop.f32.mrf.mxu0
      %825 = vdwg.mxu0
      %826 = vmatpush.bf16.msra.mxu0 0
      %827 = vmatpush.bf16.msra.mxu0 0
      %828 = vmatpush.bf16.msra.mxu0 0
      %829 = vmatpush.bf16.msra.mxu0 0
      %830 = vmatpush.bf16.msra.mxu0 0
      %831 = vmatpush.bf16.msra.mxu0 0
      %832 = vmatpush.bf16.msra.mxu0 0
      %833 = vmatpush.bf16.msra.mxu0 %v798
      %834 = vmatmul.bf16.gmra.mxu0 %v789
      %v835 = vpop.f32.mrf.mxu0
      %v836 = vadd.f32 0.0, %v835
      %v837 = vpop.f32.mrf.mxu0
      %838 = vdwg.mxu0
      %v839 = vadd.f32 %v760, %v810
      %v840 = vadd.f32 %v761, %v823
      %v841 = vadd.f32 %v762, %v836
      %v842 = vld [vmem:[#allocation2] sm:$0xff]
      %s843 = scalar_lea.vmem %s2, 32
      %v844 = vld [vmem:[%s843] sm:$0xf]
      %846 = vst [vmem:[#allocation1] ss:$4 sm:$0xff] %v842
      %v847 = vld.sshfl [vmem:[#allocation1] sm:$0xff pattern:$0x73625140]
      %v849 = vld.sshfl [vmem:[#allocation1 + $0x8] sm:$0xff pattern:$0x73625140]
      %v851 = vld.sshfl [vmem:[#allocation1 + $0x10] sm:$0xff pattern:$0x73625140]
      %v853 = vld.sshfl [vmem:[#allocation1 + $0x18] sm:$0xff pattern:$0x73625140]
      %855 = vrot.lane.b32.xlu0 %v847, 90
      %v856 = vpop.permute.xlu0 %855
      %857 = vrot.lane.b32.xlu0 %v849, 90
      %v858 = vpop.permute.xlu0 %857
      %859 = vrot.lane.b32.xlu0 %v851, 90
      %v860 = vpop.permute.xlu0 %859
      %861 = vrot.lane.b32.xlu0 %v853, 90
      %v862 = vpop.permute.xlu0 %861
      %vm863 = vcmask 736256
      %v864 = vsel %vm863, %v856, %v858
      %v865 = vsel %vm863, %v858, %v860
      %v866 = vsel %vm863, %v860, %v862
      %v868 = vsel %vm262, %v844, 0
      %v871 = vsel %vm266, %v864, 0
      %v874 = vsel %vm266, %v865, 0
      %v877 = vsel %vm266, %v866, 0
      %879 = vmatpush.bf16.msra.mxu0 0
      %880 = vmatpush.bf16.msra.mxu0 0
      %881 = vmatpush.bf16.msra.mxu0 0
      %882 = vmatpush.bf16.msra.mxu0 0
      %883 = vmatpush.bf16.msra.mxu0 0
      %884 = vmatpush.bf16.msra.mxu0 0
      %885 = vmatpush.bf16.msra.mxu0 0
      %886 = vmatpush.bf16.msra.mxu0 %v871
      %887 = vmatmul.bf16.gmra.mxu0 %v868
      %v888 = vpop.f32.mrf.mxu0
      %v889 = vadd.f32 0.0, %v888
      %v890 = vpop.f32.mrf.mxu0
      %891 = vdwg.mxu0
      %892 = vmatpush.bf16.msra.mxu0 0
      %893 = vmatpush.bf16.msra.mxu0 0
      %894 = vmatpush.bf16.msra.mxu0 0
      %895 = vmatpush.bf16.msra.mxu0 0
      %896 = vmatpush.bf16.msra.mxu0 0
      %897 = vmatpush.bf16.msra.mxu0 0
      %898 = vmatpush.bf16.msra.mxu0 0
      %899 = vmatpush.bf16.msra.mxu0 %v874
      %900 = vmatmul.bf16.gmra.mxu0 %v868
      %v901 = vpop.f32.mrf.mxu0
      %v902 = vadd.f32 0.0, %v901
      %v903 = vpop.f32.mrf.mxu0
      %904 = vdwg.mxu0
      %905 = vmatpush.bf16.msra.mxu0 0
      %906 = vmatpush.bf16.msra.mxu0 0
      %907 = vmatpush.bf16.msra.mxu0 0
      %908 = vmatpush.bf16.msra.mxu0 0
      %909 = vmatpush.bf16.msra.mxu0 0
      %910 = vmatpush.bf16.msra.mxu0 0
      %911 = vmatpush.bf16.msra.mxu0 0
      %912 = vmatpush.bf16.msra.mxu0 %v877
      %913 = vmatmul.bf16.gmra.mxu0 %v868
      %v914 = vpop.f32.mrf.mxu0
      %v915 = vadd.f32 0.0, %v914
      %v916 = vpop.f32.mrf.mxu0
      %917 = vdwg.mxu0
      %v918 = vadd.f32 %v839, %v889
      %v919 = vadd.f32 %v840, %v902
      %v920 = vadd.f32 %v841, %v915
      %v921 = vld [vmem:[%s3] sm:$0xff]
      %923 = vset.pattern.permute.xlu0 0
      %924 = vperm.xlu0 %923, %v921
      %v925 = vpop.permute.xlu0 %924
      %v927 = vadd.f32 %v918, %v925
      %v928 = vadd.f32 %v919, %v925
      %v929 = vadd.f32 %v920, %v925
      %v930 = vxor.u32 %v927, 2147483648
      %v931 = vxor.u32 %v928, 2147483648
      %v932 = vxor.u32 %v929, 2147483648
      %v933 = vmul.f32 %v930, 1.442695
      %v934 = vpow.pop %v933
      %v935 = vmul.f32 %v931, 1.442695
      %v936 = vpow.pop %v935
      %v937 = vmul.f32 %v932, 1.442695
      %v938 = vpow.pop %v937
      %v939 = vadd.f32 %v934, 1.0
      %v940 = vadd.f32 %v936, 1.0
      %v941 = vadd.f32 %v938, 1.0
      %v942 = vrcp.pop %v939
      %v943 = vmul.f32 %v939, %v942
      %v944 = vsub.f32 1.0, %v943
      %v945 = vmul.f32 %v942, %v944
      %v946 = vadd.f32 %v942, %v945
      %vm947 = vweird.f32 %v939
      %vm948 = vweird.f32 %v942
      %vm949 = vmor %vm947, %vm948
      %v950 = vsel %vm949, %v942, %v946
      %v951 = vand.u32 2147483647, %v939
      %vm952 = vcmp.eq.f32.partialorder %v951, 8.507059e+37
      %v953 = vand.u32 %v939, 2147483648
      %v954 = vor.u32 1.1754944e-38, %v953
      %v955 = vsel %vm952, %v954, %v950
      %v956 = vmul.f32 1.0, %v955
      %v957 = vrcp.pop %v940
      %v958 = vmul.f32 %v940, %v957
      %v959 = vsub.f32 1.0, %v958
      %v960 = vmul.f32 %v957, %v959
      %v961 = vadd.f32 %v957, %v960
      %vm962 = vweird.f32 %v940
      %vm963 = vweird.f32 %v957
      %vm964 = vmor %vm962, %vm963
      %v965 = vsel %vm964, %v957, %v961
      %v966 = vand.u32 2147483647, %v940
      %vm967 = vcmp.eq.f32.partialorder %v966, 8.507059e+37
      %v968 = vand.u32 %v940, 2147483648
      %v969 = vor.u32 1.1754944e-38, %v968
      %v970 = vsel %vm967, %v969, %v965
      %v971 = vmul.f32 1.0, %v970
      %v972 = vrcp.pop %v941
      %v973 = vmul.f32 %v941, %v972
      %v974 = vsub.f32 1.0, %v973
      %v975 = vmul.f32 %v972, %v974
      %v976 = vadd.f32 %v972, %v975
      %vm977 = vweird.f32 %v941
      %vm978 = vweird.f32 %v972
      %vm979 = vmor %vm977, %vm978
      %v980 = vsel %vm979, %v972, %v976
      %v981 = vand.u32 2147483647, %v941
      %vm982 = vcmp.eq.f32.partialorder %v981, 8.507059e+37
      %v983 = vand.u32 %v941, 2147483648
      %v984 = vor.u32 1.1754944e-38, %v983
      %v985 = vsel %vm982, %v984, %v980
      %v986 = vmul.f32 1.0, %v985
      %v987 = vmul.f32 %v927, %v956
      %v988 = vmul.f32 %v928, %v971
      %v989 = vmul.f32 %v929, %v986
      %990 = vst [vmem:[%s228] sm:$0xff] %v987
      %991 = vst [vmem:[%s228 + $0x8] sm:$0xff] %v988
      %992 = vst [vmem:[%s228 + $0x10] sm:$0xff] %v989
      %s993 = smul.u32 3, %s15
      %p994 = scmp.lt.s32.totalorder %s993, 5
      %s995 = scalar_select %p994, %s993, 5
      %s996 = smul.addr %s995, 8
      %s997 = scalar_lea.vmem %s4, %s996
      // Predicated region
      $region37: #{silu2d.1} parent=35 // pred_check
        %p998 = pneg %p129
      $region38: #{silu2d.1} parent=35 // pred_check_branch
        %1000 = sbr.rel (%p998) target = $region40
      $region39: #{silu2d.1} parent=35 // pred_region
        %s1001 = smul.u32 3, %s15
      $region40: #{silu2d.1} parent=35 // pred_fallthru
        _
    $region36: #{silu2d.1} parent=5 // pred_fallthru
      _
    %p1002 = scmp.le.s32.totalorder 2, %s10
    // Predicated region
    $region41: #{silu2d.1} parent=5 // pred_check
      %p1003 = pneg %p1002
    $region42: #{silu2d.1} parent=5 // pred_check_branch
      %1005 = sbr.rel (%p1003) target = $region44
    $region43: #{silu2d.1} parent=5 // pred_region
      %s1006 = ssub.s32 %s10, 2
      // Predicated region
      $region45: #{silu2d.1} parent=43 // pred_check
        %p1007 = pneg %p135
      $region46: #{silu2d.1} parent=43 // pred_check_branch
        %1009 = sbr.rel (%p1007) target = $region48
      $region47: #{silu2d.1} parent=43 // pred_region
        %s1010 = smul.u32 3, %s16
        %p1011 = scmp.lt.s32.totalorder %s1010, 5
        %s1012 = scalar_select %p1011, %s1010, 5
        %s1013 = smul.addr %s1012, 8
        %s1014 = scalar_lea.vmem %s4, %s1013
      $region48: #{silu2d.1} parent=43 // pred_fallthru
        _
    $region44: #{silu2d.1} parent=5 // pred_fallthru
      _
  $region6: #{silu2d.1} parent=0 // loop_footer
    %s14 = sadd.s32 1, %s10
  $region7: #{silu2d.1} parent=0 // loop_footer_branch
    %9 = sbr.rel target = $region3
  $region8: #{silu2d.1} parent=0 // loop_exit
    _

</llo_original>
